<compile_context>
chip_gen: v5e
topology: v5e:2x2
jax: 0.10.0
libtpu: 0.0.40
codegen_flags: <defaults>
</compile_context>

<pallas_src>
import functools

import jax
import jax.numpy as jnp
import numpy as np
from jax.experimental import pallas as pl
from jax.experimental.pallas import tpu as pltpu

F_PAD = 128   # lane-dense feature width: every feature dim is padded to 128
ROW_PAD = 8   # sublane alignment for node (row) dimensions


def _round_up(n, m=ROW_PAD):
    return ((n + m - 1) // m) * m


def _sage_fused_kernel(*refs, n_layers, dst_sizes):
    """Fused multi-layer SAGE forward.

    refs = (x_ref, A_0, Wcat_0, b_0, ..., A_{L-1}, Wcat_{L-1}, b_{L-1}, o_ref)

    Per layer (DGL SAGEConv 'mean'):
        mean = A @ x                                  (row-normalized adjacency)
        h    = [x[:n_dst] | mean] @ Wcat + b          (Wcat = [W_self ; W_neigh])
        h    = relu(h)                                (all but last layer)
    bf16 MXU operands, f32 accumulation; intermediates never leave VMEM.
    """
    x_ref = refs[0]
    o_ref = refs[-1]
    layer_refs = refs[1:-1]

    x = x_ref[...]  # [n_src0_pad, F_PAD] f32
    for l in range(n_layers):
        a_ref, w_ref, b_ref = layer_refs[3 * l : 3 * l + 3]
        n_dst = dst_sizes[l]  # padded (multiple of 8) => tile-aligned slice
        # Mean-aggregated neighbor features: [n_dst, F_PAD], f32 accumulation.
        mean = jnp.dot(
            a_ref[...],                       # bf16 [n_dst, n_src]
            x.astype(jnp.bfloat16),           # bf16 [n_src, F_PAD]
            preferred_element_type=jnp.float32,
        )
        # Merged self + neighbor projection: single matmul with K = 2*F_PAD.
        cat = jnp.concatenate([x[:n_dst, :], mean], axis=-1).astype(jnp.bfloat16)
        h = jnp.dot(cat, w_ref[...], preferred_element_type=jnp.float32)
        h = h + b_ref[...]
        if l != n_layers - 1:
            h = jnp.maximum(h, 0.0)
        x = h
    # [n_dst_last_pad, F_PAD]: lane-dense unmasked store; real rows/classes
    # are sliced back outside the kernel.
    o_ref[...] = x.astype(o_ref.dtype)


def _prepare_layer(A, W_neigh, W_self, b, n_src_pad, f_pad=F_PAD):
    """Pad node/feature dims, pre-concatenate [W_self; W_neigh], cast to bf16."""
    n_dst, n_src = A.shape
    n_dst_pad = _round_up(n_dst)
    A_pad = (
        jnp.zeros((n_dst_pad, n_src_pad), jnp.float32)
        .at[:n_dst, :n_src]
        .set(A)
        .astype(jnp.bfloat16)
    )
    f_in, f_out = W_neigh.shape
    Ws = jnp.zeros((f_pad, f_pad), jnp.float32).at[:f_in, :f_out].set(W_self)
    Wn = jnp.zeros((f_pad, f_pad), jnp.float32).at[:f_in, :f_out].set(W_neigh)
    W_cat = jnp.concatenate([Ws, Wn], axis=0).astype(jnp.bfloat16)  # [2*f_pad, f_pad]
    b_pad = jnp.zeros((1, f_pad), jnp.float32).at[:, :f_out].set(b)
    return A_pad, W_cat, b_pad, n_dst_pad


def sage_forward_pallas(blocks, x, params, n_layers, n_classes, f_pad=F_PAD):
    """Mirrors SAGE.forward (loop over (layer, block), ReLU on all but last),
    executed as ONE fused Pallas kernel."""
    n_src0, f_in = x.shape
    n_src0_pad = _round_up(n_src0)
    x_pad = jnp.zeros((n_src0_pad, f_pad), jnp.float32).at[:n_src0, :f_in].set(x)

    flat_inputs = [x_pad]
    dst_pads = []
    cur_src_pad = n_src0_pad
    for A, (W_neigh, W_self, b) in zip(blocks, params):
        A_p, W_cat, b_p, n_dst_pad = _prepare_layer(
            A, W_neigh, W_self, b, cur_src_pad, f_pad
        )
        flat_inputs.extend([A_p, W_cat, b_p])
        dst_pads.append(n_dst_pad)
        cur_src_pad = n_dst_pad
    dst_pads = tuple(dst_pads)
    n_dst_last_pad = dst_pads[-1]
    n_dst_last = int(blocks[-1].shape[0])

    # Advisory cost estimate so XLA doesn't schedule the call as zero-cost.
    flops = 0
    src_pad = n_src0_pad
    for n_dst_pad in dst_pads:
        flops += 2 * n_dst_pad * src_pad * f_pad          # A @ X
        flops += 2 * n_dst_pad * (2 * f_pad) * f_pad      # [self|mean] @ Wcat
        src_pad = n_dst_pad
    bytes_accessed = sum(int(a.size) * a.dtype.itemsize for a in flat_inputs)
    bytes_accessed += n_dst_last_pad * f_pad * 4

    kernel = functools.partial(
        _sage_fused_kernel, n_layers=n_layers, dst_sizes=dst_pads
    )
    vmem_spec = pl.BlockSpec(memory_space=pltpu.MemorySpace.VMEM)

    out_pad = pl.pallas_call(
        kernel,
        out_shape=jax.ShapeDtypeStruct((n_dst_last_pad, f_pad), jnp.float32),
        in_specs=[vmem_spec] * len(flat_inputs),
        out_specs=vmem_spec,
        cost_estimate=pl.CostEstimate(
            flops=flops, transcendentals=0, bytes_accessed=bytes_accessed
        ),
    )(*flat_inputs)
    return out_pad[:n_dst_last, :n_classes]


def sage_forward_ref(blocks, x, params, n_layers):
    """Pure-JAX f32 reference of the same forward pass."""
    for l, (A, (W_neigh, W_self, b)) in enumerate(zip(blocks, params)):
        n_dst = A.shape[0]
        mean_neigh = A @ x
        h = x[:n_dst] @ W_self + mean_neigh @ W_neigh + b
        if l != n_layers - 1:
            h = jnp.maximum(h, 0.0)
        x = h
    return x


def _make_block_adjacency(key, n_dst, n_src, p=0.3):
    """Dense row-normalized bipartite adjacency (mean aggregator); dst nodes are
    a prefix of src nodes; force a self-edge so no row is empty."""
    mask = (jax.random.uniform(key, (n_dst, n_src)) < p).astype(jnp.float32)
    eye = jnp.zeros((n_dst, n_src)).at[jnp.arange(n_dst), jnp.arange(n_dst)].set(1.0)
    mask = jnp.maximum(mask, eye)
    deg = jnp.sum(mask, axis=1, keepdims=True)
    return mask / deg


def _init_params(key, in_feats, n_hidden, n_classes, n_layers):
    dims = [in_feats] + [n_hidden] * (n_layers - 1) + [n_classes]
    params = []
    for l in range(n_layers):
        f_in, f_out = dims[l], dims[l + 1]
        key, k1, k2 = jax.random.split(key, 3)
        scale = 1.0 / jnp.sqrt(jnp.float32(f_in))
        W_neigh = jax.random.normal(k1, (f_in, f_out), jnp.float32) * scale
        W_self = jax.random.normal(k2, (f_in, f_out), jnp.float32) * scale
        b = jnp.zeros((1, f_out), jnp.float32)
        params.append((W_neigh, W_self, b))
    return params


if __name__ == "__main__":
    in_feats, n_hidden, n_classes, n_layers = 16, 32, 8, 3
    # bipartite block sizes: dst of block l == src of block l+1
    node_counts = [64, 32, 16, 8]  # src0, src1(=dst0), src2(=dst1), dst2

    key = jax.random.PRNGKey(0)
    key, kx = jax.random.split(key)
    x = jax.random.normal(kx, (node_counts[0], in_feats), jnp.float32)

    blocks = []
    for l in range(n_layers):
        key, ka = jax.random.split(key)
        blocks.append(_make_block_adjacency(ka, node_counts[l + 1], node_counts[l]))

    key, kp = jax.random.split(key)
    params = _init_params(kp, in_feats, n_hidden, n_classes, n_layers)

    out = sage_forward_pallas(blocks, x, params, n_layers, n_classes)
    out = jax.block_until_ready(out)
    assert out.shape == (node_counts[-1], n_classes), out.shape

    # Validate against the pure-JAX f32 reference (loose tolerance: kernel uses
    # bf16 matmul inputs with f32 accumulation).
    ref = sage_forward_ref(blocks, x, params, n_layers)
    np.testing.assert_allclose(np.asarray(out), np.asarray(ref), rtol=1e-1, atol=1e-1)

    print("KERNEL_OK")
</pallas_src>

<mosaic_0001>
module attributes {stable_mosaic.version = 11 : i64} {
  func.func @_sage_fused_kernel(%arg0: memref<64x128xf32, #tpu.memory_space<vmem>>, %arg1: memref<32x64xbf16, #tpu.memory_space<vmem>>, %arg2: memref<256x128xbf16, #tpu.memory_space<vmem>>, %arg3: memref<1x128xf32, #tpu.memory_space<vmem>>, %arg4: memref<16x32xbf16, #tpu.memory_space<vmem>>, %arg5: memref<256x128xbf16, #tpu.memory_space<vmem>>, %arg6: memref<1x128xf32, #tpu.memory_space<vmem>>, %arg7: memref<8x16xbf16, #tpu.memory_space<vmem>>, %arg8: memref<256x128xbf16, #tpu.memory_space<vmem>>, %arg9: memref<1x128xf32, #tpu.memory_space<vmem>>, %arg10: memref<8x128xf32, #tpu.memory_space<vmem>>) attributes {dimension_semantics = [], scalar_prefetch = 0 : i64, scratch_operands = 0 : i64, tpu.core_type = #tpu.core_type<tc>} {
    %c0 = arith.constant 0 : index
    %c0_0 = arith.constant 0 : index
    %0 = vector.load %arg0[%c0, %c0_0] : memref<64x128xf32, #tpu.memory_space<vmem>>, vector<64x128xf32>
    %c0_1 = arith.constant 0 : index
    %c0_2 = arith.constant 0 : index
    %1 = vector.load %arg1[%c0_1, %c0_2] : memref<32x64xbf16, #tpu.memory_space<vmem>>, vector<32x64xbf16>
    %2 = arith.truncf %0 : vector<64x128xf32> to vector<64x128xbf16>
    %cst = arith.constant dense<0.000000e+00> : vector<32x128xf32>
    %3 = tpu.matmul %1, %2, %cst {dimension_numbers = #tpu.dot_dimension_numbers<[1], [0], [0], [1], [0, 0, 1, 1], [], []>} : vector<32x64xbf16>, vector<64x128xbf16>, vector<32x128xf32> -> vector<32x128xf32>
    %4 = vector.extract_strided_slice %0 {offsets = [0, 0], sizes = [32, 128], strides = [1, 1]} : vector<64x128xf32> to vector<32x128xf32>
    %5 = tpu.concatenate %4, %3 in 1 : vector<32x128xf32>, vector<32x128xf32> -> vector<32x256xf32>
    %6 = arith.truncf %5 : vector<32x256xf32> to vector<32x256xbf16>
    %c0_3 = arith.constant 0 : index
    %c0_4 = arith.constant 0 : index
    %7 = vector.load %arg2[%c0_3, %c0_4] : memref<256x128xbf16, #tpu.memory_space<vmem>>, vector<256x128xbf16>
    %cst_5 = arith.constant dense<0.000000e+00> : vector<32x128xf32>
    %8 = tpu.matmul %6, %7, %cst_5 {dimension_numbers = #tpu.dot_dimension_numbers<[1], [0], [0], [1], [0, 0, 1, 1], [], []>} : vector<32x256xbf16>, vector<256x128xbf16>, vector<32x128xf32> -> vector<32x128xf32>
    %c0_6 = arith.constant 0 : index
    %c0_7 = arith.constant 0 : index
    %9 = vector.load %arg3[%c0_6, %c0_7] : memref<1x128xf32, #tpu.memory_space<vmem>>, vector<1x128xf32>
    %10 = vector.broadcast %9 : vector<1x128xf32> to vector<32x128xf32>
    %11 = arith.addf %8, %10 : vector<32x128xf32>
    %cst_8 = arith.constant 0.000000e+00 : f32
    %12 = vector.broadcast %cst_8 : f32 to vector<32x128xf32>
    %13 = arith.maximumf %11, %12 : vector<32x128xf32>
    %c0_9 = arith.constant 0 : index
    %c0_10 = arith.constant 0 : index
    %14 = vector.load %arg4[%c0_9, %c0_10] : memref<16x32xbf16, #tpu.memory_space<vmem>>, vector<16x32xbf16>
    %15 = arith.truncf %13 : vector<32x128xf32> to vector<32x128xbf16>
    %cst_11 = arith.constant dense<0.000000e+00> : vector<16x128xf32>
    %16 = tpu.matmul %14, %15, %cst_11 {dimension_numbers = #tpu.dot_dimension_numbers<[1], [0], [0], [1], [0, 0, 1, 1], [], []>} : vector<16x32xbf16>, vector<32x128xbf16>, vector<16x128xf32> -> vector<16x128xf32>
    %17 = vector.extract_strided_slice %13 {offsets = [0, 0], sizes = [16, 128], strides = [1, 1]} : vector<32x128xf32> to vector<16x128xf32>
    %18 = tpu.concatenate %17, %16 in 1 : vector<16x128xf32>, vector<16x128xf32> -> vector<16x256xf32>
    %19 = arith.truncf %18 : vector<16x256xf32> to vector<16x256xbf16>
    %c0_12 = arith.constant 0 : index
    %c0_13 = arith.constant 0 : index
    %20 = vector.load %arg5[%c0_12, %c0_13] : memref<256x128xbf16, #tpu.memory_space<vmem>>, vector<256x128xbf16>
    %cst_14 = arith.constant dense<0.000000e+00> : vector<16x128xf32>
    %21 = tpu.matmul %19, %20, %cst_14 {dimension_numbers = #tpu.dot_dimension_numbers<[1], [0], [0], [1], [0, 0, 1, 1], [], []>} : vector<16x256xbf16>, vector<256x128xbf16>, vector<16x128xf32> -> vector<16x128xf32>
    %c0_15 = arith.constant 0 : index
    %c0_16 = arith.constant 0 : index
    %22 = vector.load %arg6[%c0_15, %c0_16] : memref<1x128xf32, #tpu.memory_space<vmem>>, vector<1x128xf32>
    %23 = vector.broadcast %22 : vector<1x128xf32> to vector<16x128xf32>
    %24 = arith.addf %21, %23 : vector<16x128xf32>
    %cst_17 = arith.constant 0.000000e+00 : f32
    %25 = vector.broadcast %cst_17 : f32 to vector<16x128xf32>
    %26 = arith.maximumf %24, %25 : vector<16x128xf32>
    %c0_18 = arith.constant 0 : index
    %c0_19 = arith.constant 0 : index
    %27 = vector.load %arg7[%c0_18, %c0_19] : memref<8x16xbf16, #tpu.memory_space<vmem>>, vector<8x16xbf16>
    %28 = arith.truncf %26 : vector<16x128xf32> to vector<16x128xbf16>
    %cst_20 = arith.constant dense<0.000000e+00> : vector<8x128xf32>
    %29 = tpu.matmul %27, %28, %cst_20 {dimension_numbers = #tpu.dot_dimension_numbers<[1], [0], [0], [1], [0, 0, 1, 1], [], []>} : vector<8x16xbf16>, vector<16x128xbf16>, vector<8x128xf32> -> vector<8x128xf32>
    %30 = vector.extract_strided_slice %26 {offsets = [0, 0], sizes = [8, 128], strides = [1, 1]} : vector<16x128xf32> to vector<8x128xf32>
    %31 = tpu.concatenate %30, %29 in 1 : vector<8x128xf32>, vector<8x128xf32> -> vector<8x256xf32>
    %32 = arith.truncf %31 : vector<8x256xf32> to vector<8x256xbf16>
    %c0_21 = arith.constant 0 : index
    %c0_22 = arith.constant 0 : index
    %33 = vector.load %arg8[%c0_21, %c0_22] : memref<256x128xbf16, #tpu.memory_space<vmem>>, vector<256x128xbf16>
    %cst_23 = arith.constant dense<0.000000e+00> : vector<8x128xf32>
    %34 = tpu.matmul %32, %33, %cst_23 {dimension_numbers = #tpu.dot_dimension_numbers<[1], [0], [0], [1], [0, 0, 1, 1], [], []>} : vector<8x256xbf16>, vector<256x128xbf16>, vector<8x128xf32> -> vector<8x128xf32>
    %c0_24 = arith.constant 0 : index
    %c0_25 = arith.constant 0 : index
    %35 = vector.load %arg9[%c0_24, %c0_25] : memref<1x128xf32, #tpu.memory_space<vmem>>, vector<1x128xf32>
    %36 = vector.broadcast %35 : vector<1x128xf32> to vector<8x128xf32>
    %37 = arith.addf %34, %36 : vector<8x128xf32>
    %c0_26 = arith.constant 0 : index
    %c0_27 = arith.constant 0 : index
    %38 = vector.load %arg10[%c0_26, %c0_27] : memref<8x128xf32, #tpu.memory_space<vmem>>, vector<8x128xf32>
    tpu.vector_store %arg10[%c0_26, %c0_27], %37 {strides = array<i32>} : memref<8x128xf32, #tpu.memory_space<vmem>>, vector<8x128xf32>,
    return
  }
}

</mosaic_0001>

<llo_original>
// kernel: tpu_custom_call.1
$region0: #{tpu_custom_call.1}
  #allocation0 [shape = 'u32[]', space=smem, size = 0x4, offset = 0x4, fixed_abs, tag = 'smem constant byte address 0x4 - core index']
  #allocation1 [shape = 'u32[72,128]{1,0:T(1,128)}', space=vmem, size = 0x9000, scoped, tag = 'internal scratch']
  %s0 = inlined_call_operand.hbm [shape: f32[64,128], index: 0, kind: input, shape index: {}]
  %s1 = inlined_call_operand.hbm [shape: bf16[32,64], index: 1, kind: input, shape index: {}]
  %s2 = inlined_call_operand.hbm [shape: bf16[256,128], index: 2, kind: input, shape index: {}]
  %s3 = inlined_call_operand.vmem [shape: f32[1,128], index: 3, kind: input, shape index: {}]
  %s4 = inlined_call_operand.hbm [shape: bf16[16,32], index: 4, kind: input, shape index: {}]
  %s5 = inlined_call_operand.hbm [shape: bf16[256,128], index: 5, kind: input, shape index: {}]
  %s6 = inlined_call_operand.vmem [shape: f32[1,128], index: 6, kind: input, shape index: {}]
  %s7 = inlined_call_operand.vmem [shape: bf16[8,16], index: 7, kind: input, shape index: {}]
  %s8 = inlined_call_operand.hbm [shape: bf16[256,128], index: 8, kind: input, shape index: {}]
  %s9 = inlined_call_operand.vmem [shape: f32[1,128], index: 9, kind: input, shape index: {}]
  %s10 = inlined_call_operand.hbm [shape: f32[8,128], index: 10, kind: output, shape index: {}]
  %s11 = sld [smem:[#allocation0]]
  $region74: #{tpu_custom_call.1} parent=0
    _
  %s13 = ssub.s32 1, %s11
  %s14 = scalar_select 0, %s13, %s11
  $region1: #{tpu_custom_call.1} parent=0
    #allocation2 [shape = 'u8[32768]{0}', space=vmem, size = 0x8000, scoped, tag = 'input window, operand 0, single buffered']
    #allocation3 [shape = 's32[1]{0}', space=sflag, size = 0x4, scoped, tag = 'scoped memory for tpu_custom_call.1']
    #allocation4 [shape = 's32[1]{0}', space=sflag, size = 0x4, scoped, tag = 'scoped memory for tpu_custom_call.1']
    #allocation5 [shape = 'u8[8192]{0}', space=vmem, size = 0x2000, scoped, tag = 'input window, operand 1, single buffered']
    #allocation6 [shape = 's32[1]{0}', space=sflag, size = 0x4, scoped, tag = 'scoped memory for tpu_custom_call.1']
    #allocation7 [shape = 'u8[65536]{0}', space=vmem, size = 0x10000, scoped, tag = 'input window, operand 2, single buffered']
    #allocation8 [shape = 'u8[4096]{0}', space=vmem, size = 0x1000, scoped, tag = 'input window, operand 4, single buffered']
    #allocation9 [shape = 's32[1]{0}', space=sflag, size = 0x4, scoped, tag = 'scoped memory for tpu_custom_call.1']
    #allocation10 [shape = 'u8[65536]{0}', space=vmem, size = 0x10000, scoped, tag = 'input window, operand 5, single buffered']
    #allocation11 [shape = 'u8[65536]{0}', space=vmem, size = 0x10000, scoped, tag = 'input window, operand 8, single buffered']
    #allocation12 [shape = 's32[1]{0}', space=sflag, size = 0x4, scoped, tag = 'scoped memory for tpu_custom_call.1']
    #allocation13 [shape = 'u8[4096]{0}', space=vmem, size = 0x1000, scoped, tag = 'output window, operand 0, single buffered']
    %15 = vsyncpa [#allocation3], 0
    %16 = vsyncpa [#allocation6], 0
    %17 = vsyncpa [#allocation9], 0
    %18 = vsyncpa [#allocation12], 0
    %19 = vsyncpa [#allocation4], 0
    // Predicated region
    $region2: #{tpu_custom_call.1} parent=1 // pred_check
      _
    $region3: #{tpu_custom_call.1} parent=1 // pred_check_branch
      %21 = sbr.rel (0) target = $region5
    $region4: #{tpu_custom_call.1} parent=1 // pred_region
      %23 = vsyncadd [#allocation3], 0
      %s24 = sshll.u32 %s0, 4
      %s25 = int_to_ptr.hbm [resolvable:$true] %s24
      %s26 = sshll.u32 [#allocation2], 4
      %s27 = int_to_ptr.vmem [resolvable:$true] %s26
      %32 = dma.hbm_to_vmem [thread:$0]  %s25, 1024, %s27, [#allocation3], 128, 128, 8
    $region5: #{tpu_custom_call.1} parent=1 // pred_fallthru
      _
    // Predicated region
    $region6: #{tpu_custom_call.1} parent=1 // pred_check
      _
    $region7: #{tpu_custom_call.1} parent=1 // pred_check_branch
      %34 = sbr.rel (0) target = $region9
    $region8: #{tpu_custom_call.1} parent=1 // pred_region
      %36 = vsyncadd [#allocation6], 0
      %s37 = sshll.u32 %s1, 4
      %s38 = int_to_ptr.hbm [resolvable:$true] %s37
      %s39 = sshll.u32 [#allocation5], 4
      %s40 = int_to_ptr.vmem [resolvable:$true] %s39
      %45 = dma.hbm_to_vmem [thread:$0]  %s38, 256, %s40, [#allocation6], 64, 64, 4
    $region9: #{tpu_custom_call.1} parent=1 // pred_fallthru
      _
    // Predicated region
    $region10: #{tpu_custom_call.1} parent=1 // pred_check
      _
    $region11: #{tpu_custom_call.1} parent=1 // pred_check_branch
      %47 = sbr.rel (0) target = $region13
    $region12: #{tpu_custom_call.1} parent=1 // pred_region
      %49 = vsyncadd [#allocation6], 0
      %s50 = sshll.u32 %s2, 4
      %s51 = int_to_ptr.hbm [resolvable:$true] %s50
      %s52 = sshll.u32 [#allocation7], 4
      %s53 = int_to_ptr.vmem [resolvable:$true] %s52
      %58 = dma.hbm_to_vmem [thread:$0]  %s51, 2048, %s53, [#allocation6], 64, 64, 4
    $region13: #{tpu_custom_call.1} parent=1 // pred_fallthru
      _
    // Predicated region
    $region14: #{tpu_custom_call.1} parent=1 // pred_check
      _
    $region15: #{tpu_custom_call.1} parent=1 // pred_check_branch
      %60 = sbr.rel (0) target = $region17
    $region16: #{tpu_custom_call.1} parent=1 // pred_region
      _
    $region17: #{tpu_custom_call.1} parent=1 // pred_fallthru
      _
    // Predicated region
    $region18: #{tpu_custom_call.1} parent=1 // pred_check
      _
    $region19: #{tpu_custom_call.1} parent=1 // pred_check_branch
      %62 = sbr.rel (0) target = $region21
    $region20: #{tpu_custom_call.1} parent=1 // pred_region
      %64 = vsyncadd [#allocation9], 0
      %s65 = sshll.u32 %s4, 4
      %s66 = int_to_ptr.hbm [resolvable:$true] %s65
      %s67 = sshll.u32 [#allocation8], 4
      %s68 = int_to_ptr.vmem [resolvable:$true] %s67
      %73 = dma.hbm_to_vmem [thread:$0]  %s66, 128, %s68, [#allocation9], 64, 64, 4
    $region21: #{tpu_custom_call.1} parent=1 // pred_fallthru
      _
    // Predicated region
    $region22: #{tpu_custom_call.1} parent=1 // pred_check
      _
    $region23: #{tpu_custom_call.1} parent=1 // pred_check_branch
      %75 = sbr.rel (0) target = $region25
    $region24: #{tpu_custom_call.1} parent=1 // pred_region
      %77 = vsyncadd [#allocation9], 0
      %s78 = sshll.u32 %s5, 4
      %s79 = int_to_ptr.hbm [resolvable:$true] %s78
      %s80 = sshll.u32 [#allocation10], 4
      %s81 = int_to_ptr.vmem [resolvable:$true] %s80
      %86 = dma.hbm_to_vmem [thread:$0]  %s79, 2048, %s81, [#allocation9], 64, 64, 4
    $region25: #{tpu_custom_call.1} parent=1 // pred_fallthru
      _
    // Predicated region
    $region26: #{tpu_custom_call.1} parent=1 // pred_check
      _
    $region27: #{tpu_custom_call.1} parent=1 // pred_check_branch
      %88 = sbr.rel (0) target = $region29
    $region28: #{tpu_custom_call.1} parent=1 // pred_region
      _
    $region29: #{tpu_custom_call.1} parent=1 // pred_fallthru
      _
    // Predicated region
    $region30: #{tpu_custom_call.1} parent=1 // pred_check
      _
    $region31: #{tpu_custom_call.1} parent=1 // pred_check_branch
      %90 = sbr.rel (0) target = $region33
    $region32: #{tpu_custom_call.1} parent=1 // pred_region
      _
    $region33: #{tpu_custom_call.1} parent=1 // pred_fallthru
      _
    // Predicated region
    $region34: #{tpu_custom_call.1} parent=1 // pred_check
      _
    $region35: #{tpu_custom_call.1} parent=1 // pred_check_branch
      %92 = sbr.rel (0) target = $region37
    $region36: #{tpu_custom_call.1} parent=1 // pred_region
      %94 = vsyncadd [#allocation12], 0
      %s95 = sshll.u32 %s8, 4
      %s96 = int_to_ptr.hbm [resolvable:$true] %s95
      %s97 = sshll.u32 [#allocation11], 4
      %s98 = int_to_ptr.vmem [resolvable:$true] %s97
      %103 = dma.hbm_to_vmem [thread:$0]  %s96, 2048, %s98, [#allocation12], 64, 64, 4
    $region37: #{tpu_custom_call.1} parent=1 // pred_fallthru
      _
    // Predicated region
    $region38: #{tpu_custom_call.1} parent=1 // pred_check
      _
    $region39: #{tpu_custom_call.1} parent=1 // pred_check_branch
      %105 = sbr.rel (0) target = $region41
    $region40: #{tpu_custom_call.1} parent=1 // pred_region
      _
    $region41: #{tpu_custom_call.1} parent=1 // pred_fallthru
      _
    // Predicated region
    $region42: #{tpu_custom_call.1} parent=1 // pred_check
      _
    $region43: #{tpu_custom_call.1} parent=1 // pred_check_branch
      %107 = sbr.rel (0) target = $region45
    $region44: #{tpu_custom_call.1} parent=1 // pred_region
      %109 = dma.done [#allocation3], 1024
    $region45: #{tpu_custom_call.1} parent=1 // pred_fallthru
      _
    // Predicated region
    $region46: #{tpu_custom_call.1} parent=1 // pred_check
      _
    $region47: #{tpu_custom_call.1} parent=1 // pred_check_branch
      %111 = sbr.rel (0) target = $region49
    $region48: #{tpu_custom_call.1} parent=1 // pred_region
      %113 = dma.done [#allocation6], 256
    $region49: #{tpu_custom_call.1} parent=1 // pred_fallthru
      _
    // Predicated region
    $region50: #{tpu_custom_call.1} parent=1 // pred_check
      _
    $region51: #{tpu_custom_call.1} parent=1 // pred_check_branch
      %115 = sbr.rel (0) target = $region53
    $region52: #{tpu_custom_call.1} parent=1 // pred_region
      %117 = dma.done [#allocation6], 2048
    $region53: #{tpu_custom_call.1} parent=1 // pred_fallthru
      _
    // Predicated region
    $region54: #{tpu_custom_call.1} parent=1 // pred_check
      _
    $region55: #{tpu_custom_call.1} parent=1 // pred_check_branch
      %119 = sbr.rel (0) target = $region57
    $region56: #{tpu_custom_call.1} parent=1 // pred_region
      %121 = dma.done [#allocation9], 128
    $region57: #{tpu_custom_call.1} parent=1 // pred_fallthru
      _
    // Predicated region
    $region58: #{tpu_custom_call.1} parent=1 // pred_check
      _
    $region59: #{tpu_custom_call.1} parent=1 // pred_check_branch
      %123 = sbr.rel (0) target = $region61
    $region60: #{tpu_custom_call.1} parent=1 // pred_region
      %125 = dma.done [#allocation9], 2048
    $region61: #{tpu_custom_call.1} parent=1 // pred_fallthru
      _
    // Predicated region
    $region62: #{tpu_custom_call.1} parent=1 // pred_check
      _
    $region63: #{tpu_custom_call.1} parent=1 // pred_check_branch
      %127 = sbr.rel (0) target = $region65
    $region64: #{tpu_custom_call.1} parent=1 // pred_region
      %129 = dma.done [#allocation12], 2048
    $region65: #{tpu_custom_call.1} parent=1 // pred_fallthru
      _
    %v131 = vld [vmem:[#allocation2] sm:$0xff]
    %v132 = vld [vmem:[#allocation2 + $0x8] sm:$0xff]
    %v133 = vld [vmem:[#allocation2 + $0x10] sm:$0xff]
    %v134 = vld [vmem:[#allocation2 + $0x18] sm:$0xff]
    %v135 = vld [vmem:[#allocation2 + $0x20] sm:$0xff]
    %v136 = vld [vmem:[#allocation2 + $0x28] sm:$0xff]
    %v137 = vld [vmem:[#allocation2 + $0x30] sm:$0xff]
    %v138 = vld [vmem:[#allocation2 + $0x38] sm:$0xff]
    %v139 = vld [vmem:[#allocation5] sm:$0xf]
    %v140 = vld [vmem:[#allocation5 + $0x4] sm:$0xf]
    %v141 = vld [vmem:[#allocation5 + $0x8] sm:$0xf]
    %v142 = vld [vmem:[#allocation5 + $0xc] sm:$0xf]
    %v143 = vpack.c.bf16 %v132, %v131
    %v144 = vpack.c.bf16 %v134, %v133
    %v145 = vpack.c.bf16 %v136, %v135
    %v146 = vpack.c.bf16 %v138, %v137
    %v151 = vunpack.c.l.b16 %v139
    %v152 = vunpack.c.l.b16 %v140
    %v153 = vunpack.c.l.b16 %v141
    %v154 = vunpack.c.l.b16 %v142
    %v155 = vpack.c.b16 %v152, %v151
    %v156 = vpack.c.b16 %v154, %v153
    %vm157 = vcmask 523264
    %v159 = vsel %vm157, %v155, 0
    %v162 = vsel %vm157, %v156, 0
    %164 = vmatpush.bf16.msra.mxu0 0
    %165 = vmatpush.bf16.msra.mxu0 0
    %166 = vmatpush.bf16.msra.mxu0 0
    %167 = vmatpush.bf16.msra.mxu0 0
    %168 = vmatpush.bf16.msra.mxu0 %v146
    %169 = vmatpush.bf16.msra.mxu0 %v145
    %170 = vmatpush.bf16.msra.mxu0 %v144
    %171 = vmatpush.bf16.msra.mxu0 %v143
    %172 = vmatmul.bf16.gmra.mxu0 %v159
    %v173 = vpop.f32.mrf.mxu0
    %v174 = vadd.f32 0.0, %v173
    %v175 = vpop.f32.mrf.mxu0
    %v176 = vadd.f32 0.0, %v175
    %177 = vmatmul.bf16.gmra.mxu0 %v162
    %v178 = vpop.f32.mrf.mxu0
    %v179 = vadd.f32 0.0, %v178
    %v180 = vpop.f32.mrf.mxu0
    %v181 = vadd.f32 0.0, %v180
    %182 = vdwg.mxu0
    %v183 = vpack.c.bf16 %v176, %v174
    %v184 = vpack.c.bf16 %v181, %v179
    %v185 = vld [vmem:[#allocation7] sm:$0xf]
    %v186 = vld [vmem:[#allocation7 + $0x4] sm:$0xf]
    %v187 = vld [vmem:[#allocation7 + $0x8] sm:$0xf]
    %v188 = vld [vmem:[#allocation7 + $0xc] sm:$0xf]
    %v189 = vld [vmem:[#allocation7 + $0x10] sm:$0xf]
    %v190 = vld [vmem:[#allocation7 + $0x14] sm:$0xf]
    %v191 = vld [vmem:[#allocation7 + $0x18] sm:$0xf]
    %v192 = vld [vmem:[#allocation7 + $0x1c] sm:$0xf]
    %v193 = vld [vmem:[#allocation7 + $0x20] sm:$0xf]
    %v194 = vld [vmem:[#allocation7 + $0x24] sm:$0xf]
    %v195 = vld [vmem:[#allocation7 + $0x28] sm:$0xf]
    %v196 = vld [vmem:[#allocation7 + $0x2c] sm:$0xf]
    %v197 = vld [vmem:[#allocation7 + $0x30] sm:$0xf]
    %v198 = vld [vmem:[#allocation7 + $0x34] sm:$0xf]
    %v199 = vld [vmem:[#allocation7 + $0x38] sm:$0xf]
    %v200 = vld [vmem:[#allocation7 + $0x3c] sm:$0xf]
    %v201 = vld [vmem:[#allocation7 + $0x40] sm:$0xf]
    %v202 = vld [vmem:[#allocation7 + $0x44] sm:$0xf]
    %v203 = vld [vmem:[#allocation7 + $0x48] sm:$0xf]
    %v204 = vld [vmem:[#allocation7 + $0x4c] sm:$0xf]
    %v205 = vld [vmem:[#allocation7 + $0x50] sm:$0xf]
    %v206 = vld [vmem:[#allocation7 + $0x54] sm:$0xf]
    %v207 = vld [vmem:[#allocation7 + $0x58] sm:$0xf]
    %v208 = vld [vmem:[#allocation7 + $0x5c] sm:$0xf]
    %v209 = vld [vmem:[#allocation7 + $0x60] sm:$0xf]
    %v210 = vld [vmem:[#allocation7 + $0x64] sm:$0xf]
    %v211 = vld [vmem:[#allocation7 + $0x68] sm:$0xf]
    %v212 = vld [vmem:[#allocation7 + $0x6c] sm:$0xf]
    %v213 = vld [vmem:[#allocation7 + $0x70] sm:$0xf]
    %v214 = vld [vmem:[#allocation7 + $0x74] sm:$0xf]
    %v215 = vld [vmem:[#allocation7 + $0x78] sm:$0xf]
    %v216 = vld [vmem:[#allocation7 + $0x7c] sm:$0xf]
    %v217 = vld [vmem:[%s3] sm:$0x1]
    %v219 = vperm.slane %v217, 0
    %v253 = vunpack.c.l.b16 %v185
    %v254 = vunpack.c.l.b16 %v186
    %v255 = vunpack.c.l.b16 %v187
    %v256 = vunpack.c.l.b16 %v188
    %v257 = vunpack.c.l.b16 %v189
    %v258 = vunpack.c.l.b16 %v190
    %v259 = vunpack.c.l.b16 %v191
    %v260 = vunpack.c.l.b16 %v192
    %v261 = vunpack.c.l.b16 %v193
    %v262 = vunpack.c.l.b16 %v194
    %v263 = vunpack.c.l.b16 %v195
    %v264 = vunpack.c.l.b16 %v196
    %v265 = vunpack.c.l.b16 %v197
    %v266 = vunpack.c.l.b16 %v198
    %v267 = vunpack.c.l.b16 %v199
    %v268 = vunpack.c.l.b16 %v200
    %v269 = vunpack.c.l.b16 %v201
    %v270 = vunpack.c.l.b16 %v202
    %v271 = vunpack.c.l.b16 %v203
    %v272 = vunpack.c.l.b16 %v204
    %v273 = vunpack.c.l.b16 %v205
    %v274 = vunpack.c.l.b16 %v206
    %v275 = vunpack.c.l.b16 %v207
    %v276 = vunpack.c.l.b16 %v208
    %v277 = vunpack.c.l.b16 %v209
    %v278 = vunpack.c.l.b16 %v210
    %v279 = vunpack.c.l.b16 %v211
    %v280 = vunpack.c.l.b16 %v212
    %v281 = vunpack.c.l.b16 %v213
    %v282 = vunpack.c.l.b16 %v214
    %v283 = vunpack.c.l.b16 %v215
    %v284 = vunpack.c.l.b16 %v216
    %v285 = vpack.c.b16 %v254, %v253
    %v286 = vpack.c.b16 %v256, %v255
    %v287 = vpack.c.b16 %v258, %v257
    %v288 = vpack.c.b16 %v260, %v259
    %v289 = vpack.c.b16 %v262, %v261
    %v290 = vpack.c.b16 %v264, %v263
    %v291 = vpack.c.b16 %v266, %v265
    %v292 = vpack.c.b16 %v268, %v267
    %v293 = vpack.c.b16 %v270, %v269
    %v294 = vpack.c.b16 %v272, %v271
    %v295 = vpack.c.b16 %v274, %v273
    %v296 = vpack.c.b16 %v276, %v275
    %v297 = vpack.c.b16 %v278, %v277
    %v298 = vpack.c.b16 %v280, %v279
    %v299 = vpack.c.b16 %v282, %v281
    %v300 = vpack.c.b16 %v284, %v283
    %317 = vmatpush.bf16.msra.mxu0 %v292
    %318 = vmatpush.bf16.msra.mxu0 %v291
    %319 = vmatpush.bf16.msra.mxu0 %v290
    %320 = vmatpush.bf16.msra.mxu0 %v289
    %321 = vmatpush.bf16.msra.mxu0 %v288
    %322 = vmatpush.bf16.msra.mxu0 %v287
    %323 = vmatpush.bf16.msra.mxu0 %v286
    %324 = vmatpush.bf16.msra.mxu0 %v285
    %325 = vmatmul.bf16.gmra.mxu0 %v143
    %v326 = vpop.f32.mrf.mxu0
    %v327 = vadd.f32 %v219, %v326
    %v328 = vpop.f32.mrf.mxu0
    %v329 = vadd.f32 %v219, %v328
    %330 = vmatmul.bf16.gmra.mxu0 %v144
    %v331 = vpop.f32.mrf.mxu0
    %v332 = vadd.f32 %v219, %v331
    %v333 = vpop.f32.mrf.mxu0
    %v334 = vadd.f32 %v219, %v333
    %335 = vdwg.mxu0
    %336 = vmatpush.bf16.msra.mxu0 %v300
    %337 = vmatpush.bf16.msra.mxu0 %v299
    %338 = vmatpush.bf16.msra.mxu0 %v298
    %339 = vmatpush.bf16.msra.mxu0 %v297
    %340 = vmatpush.bf16.msra.mxu0 %v296
    %341 = vmatpush.bf16.msra.mxu0 %v295
    %342 = vmatpush.bf16.msra.mxu0 %v294
    %343 = vmatpush.bf16.msra.mxu0 %v293
    %344 = vmatmul.bf16.gmra.mxu0 %v183
    %v345 = vpop.f32.mrf.mxu0
    %v346 = vadd.f32 %v327, %v345
    %v347 = vpop.f32.mrf.mxu0
    %v348 = vadd.f32 %v329, %v347
    %349 = vmatmul.bf16.gmra.mxu0 %v184
    %v350 = vpop.f32.mrf.mxu0
    %v351 = vadd.f32 %v332, %v350
    %v352 = vpop.f32.mrf.mxu0
    %v353 = vadd.f32 %v334, %v352
    %354 = vdwg.mxu0
    %v355 = vmax.f32 %v346, 0.0
    %v356 = vmax.f32 %v348, 0.0
    %v357 = vmax.f32 %v351, 0.0
    %v358 = vmax.f32 %v353, 0.0
    %v359 = vld [vmem:[#allocation8] sm:$0xf]
    %v360 = vld [vmem:[#allocation8 + $0x4] sm:$0xf]
    %v361 = vpack.c.bf16 %v356, %v355
    %v362 = vpack.c.bf16 %v358, %v357
    %v365 = vunpack.c.l.b16 %v359
    %v366 = vunpack.c.l.b16 %v360
    %v367 = vpack.c.b16 %v366, %v365
    %vm368 = vcmask 261120
    %v370 = vsel %vm368, %v367, 0
    %372 = vmatpush.bf16.msra.mxu0 0
    %373 = vmatpush.bf16.msra.mxu0 0
    %374 = vmatpush.bf16.msra.mxu0 0
    %375 = vmatpush.bf16.msra.mxu0 0
    %376 = vmatpush.bf16.msra.mxu0 0
    %377 = vmatpush.bf16.msra.mxu0 0
    %378 = vmatpush.bf16.msra.mxu0 %v362
    %379 = vmatpush.bf16.msra.mxu0 %v361
    %380 = vmatmul.bf16.gmra.mxu0 %v370
    %v381 = vpop.f32.mrf.mxu0
    %v382 = vadd.f32 0.0, %v381
    %v383 = vpop.f32.mrf.mxu0
    %v384 = vadd.f32 0.0, %v383
    %385 = vdwg.mxu0
    %v386 = vpack.c.bf16 %v384, %v382
    %v387 = vld [vmem:[#allocation10] sm:$0xf]
    %v388 = vld [vmem:[#allocation10 + $0x4] sm:$0xf]
    %v389 = vld [vmem:[#allocation10 + $0x8] sm:$0xf]
    %v390 = vld [vmem:[#allocation10 + $0xc] sm:$0xf]
    %v391 = vld [vmem:[#allocation10 + $0x10] sm:$0xf]
    %v392 = vld [vmem:[#allocation10 + $0x14] sm:$0xf]
    %v393 = vld [vmem:[#allocation10 + $0x18] sm:$0xf]
    %v394 = vld [vmem:[#allocation10 + $0x1c] sm:$0xf]
    %v395 = vld [vmem:[#allocation10 + $0x20] sm:$0xf]
    %v396 = vld [vmem:[#allocation10 + $0x24] sm:$0xf]
    %v397 = vld [vmem:[#allocation10 + $0x28] sm:$0xf]
    %v398 = vld [vmem:[#allocation10 + $0x2c] sm:$0xf]
    %v399 = vld [vmem:[#allocation10 + $0x30] sm:$0xf]
    %v400 = vld [vmem:[#allocation10 + $0x34] sm:$0xf]
    %v401 = vld [vmem:[#allocation10 + $0x38] sm:$0xf]
    %v402 = vld [vmem:[#allocation10 + $0x3c] sm:$0xf]
    %v403 = vld [vmem:[#allocation10 + $0x40] sm:$0xf]
    %v404 = vld [vmem:[#allocation10 + $0x44] sm:$0xf]
    %v405 = vld [vmem:[#allocation10 + $0x48] sm:$0xf]
    %v406 = vld [vmem:[#allocation10 + $0x4c] sm:$0xf]
    %v407 = vld [vmem:[#allocation10 + $0x50] sm:$0xf]
    %v408 = vld [vmem:[#allocation10 + $0x54] sm:$0xf]
    %v409 = vld [vmem:[#allocation10 + $0x58] sm:$0xf]
    %v410 = vld [vmem:[#allocation10 + $0x5c] sm:$0xf]
    %v411 = vld [vmem:[#allocation10 + $0x60] sm:$0xf]
    %v412 = vld [vmem:[#allocation10 + $0x64] sm:$0xf]
    %v413 = vld [vmem:[#allocation10 + $0x68] sm:$0xf]
    %v414 = vld [vmem:[#allocation10 + $0x6c] sm:$0xf]
    %v415 = vld [vmem:[#allocation10 + $0x70] sm:$0xf]
    %v416 = vld [vmem:[#allocation10 + $0x74] sm:$0xf]
    %v417 = vld [vmem:[#allocation10 + $0x78] sm:$0xf]
    %v418 = vld [vmem:[#allocation10 + $0x7c] sm:$0xf]
    %v419 = vld [vmem:[%s6] sm:$0x1]
    %v421 = vperm.slane %v419, 0
    %v455 = vunpack.c.l.b16 %v387
    %v456 = vunpack.c.l.b16 %v388
    %v457 = vunpack.c.l.b16 %v389
    %v458 = vunpack.c.l.b16 %v390
    %v459 = vunpack.c.l.b16 %v391
    %v460 = vunpack.c.l.b16 %v392
    %v461 = vunpack.c.l.b16 %v393
    %v462 = vunpack.c.l.b16 %v394
    %v463 = vunpack.c.l.b16 %v395
    %v464 = vunpack.c.l.b16 %v396
    %v465 = vunpack.c.l.b16 %v397
    %v466 = vunpack.c.l.b16 %v398
    %v467 = vunpack.c.l.b16 %v399
    %v468 = vunpack.c.l.b16 %v400
    %v469 = vunpack.c.l.b16 %v401
    %v470 = vunpack.c.l.b16 %v402
    %v471 = vunpack.c.l.b16 %v403
    %v472 = vunpack.c.l.b16 %v404
    %v473 = vunpack.c.l.b16 %v405
    %v474 = vunpack.c.l.b16 %v406
    %v475 = vunpack.c.l.b16 %v407
    %v476 = vunpack.c.l.b16 %v408
    %v477 = vunpack.c.l.b16 %v409
    %v478 = vunpack.c.l.b16 %v410
    %v479 = vunpack.c.l.b16 %v411
    %v480 = vunpack.c.l.b16 %v412
    %v481 = vunpack.c.l.b16 %v413
    %v482 = vunpack.c.l.b16 %v414
    %v483 = vunpack.c.l.b16 %v415
    %v484 = vunpack.c.l.b16 %v416
    %v485 = vunpack.c.l.b16 %v417
    %v486 = vunpack.c.l.b16 %v418
    %v487 = vpack.c.b16 %v456, %v455
    %v488 = vpack.c.b16 %v458, %v457
    %v489 = vpack.c.b16 %v460, %v459
    %v490 = vpack.c.b16 %v462, %v461
    %v491 = vpack.c.b16 %v464, %v463
    %v492 = vpack.c.b16 %v466, %v465
    %v493 = vpack.c.b16 %v468, %v467
    %v494 = vpack.c.b16 %v470, %v469
    %v495 = vpack.c.b16 %v472, %v471
    %v496 = vpack.c.b16 %v474, %v473
    %v497 = vpack.c.b16 %v476, %v475
    %v498 = vpack.c.b16 %v478, %v477
    %v499 = vpack.c.b16 %v480, %v479
    %v500 = vpack.c.b16 %v482, %v481
    %v501 = vpack.c.b16 %v484, %v483
    %v502 = vpack.c.b16 %v486, %v485
    %519 = vmatpush.bf16.msra.mxu0 %v494
    %520 = vmatpush.bf16.msra.mxu0 %v493
    %521 = vmatpush.bf16.msra.mxu0 %v492
    %522 = vmatpush.bf16.msra.mxu0 %v491
    %523 = vmatpush.bf16.msra.mxu0 %v490
    %524 = vmatpush.bf16.msra.mxu0 %v489
    %525 = vmatpush.bf16.msra.mxu0 %v488
    %526 = vmatpush.bf16.msra.mxu0 %v487
    %527 = vmatmul.bf16.gmra.mxu0 %v361
    %v528 = vpop.f32.mrf.mxu0
    %v529 = vadd.f32 %v421, %v528
    %v530 = vpop.f32.mrf.mxu0
    %v531 = vadd.f32 %v421, %v530
    %532 = vdwg.mxu0
    %533 = vmatpush.bf16.msra.mxu0 %v502
    %534 = vmatpush.bf16.msra.mxu0 %v501
    %535 = vmatpush.bf16.msra.mxu0 %v500
    %536 = vmatpush.bf16.msra.mxu0 %v499
    %537 = vmatpush.bf16.msra.mxu0 %v498
    %538 = vmatpush.bf16.msra.mxu0 %v497
    %539 = vmatpush.bf16.msra.mxu0 %v496
    %540 = vmatpush.bf16.msra.mxu0 %v495
    %541 = vmatmul.bf16.gmra.mxu0 %v386
    %v542 = vpop.f32.mrf.mxu0
    %v543 = vadd.f32 %v529, %v542
    %v544 = vpop.f32.mrf.mxu0
    %v545 = vadd.f32 %v531, %v544
    %546 = vdwg.mxu0
    %v547 = vmax.f32 %v543, 0.0
    %v548 = vmax.f32 %v545, 0.0
    %v549 = vld [vmem:[%s7] sm:$0xf]
    %v550 = vpack.c.bf16 %v548, %v547
    %vm551 = vcmask 130048
    %v553 = vsel %vm551, %v549, 0
    %555 = vmatpush.bf16.msra.mxu0 0
    %556 = vmatpush.bf16.msra.mxu0 0
    %557 = vmatpush.bf16.msra.mxu0 0
    %558 = vmatpush.bf16.msra.mxu0 0
    %559 = vmatpush.bf16.msra.mxu0 0
    %560 = vmatpush.bf16.msra.mxu0 0
    %561 = vmatpush.bf16.msra.mxu0 0
    %562 = vmatpush.bf16.msra.mxu0 %v550
    %563 = vmatmul.bf16.gmra.mxu0 %v553
    %v564 = vpop.f32.mrf.mxu0
    %v565 = vadd.f32 0.0, %v564
    %v566 = vpop.f32.mrf.mxu0
    %567 = vdwg.mxu0
    %v568 = vpack.c.bf16 %v547, %v547
    %v569 = vpack.c.bf16 %v565, %v565
    %v570 = vld [vmem:[#allocation11] sm:$0xf]
    %v571 = vld [vmem:[#allocation11 + $0x4] sm:$0xf]
    %v572 = vld [vmem:[#allocation11 + $0x8] sm:$0xf]
    %v573 = vld [vmem:[#allocation11 + $0xc] sm:$0xf]
    %v574 = vld [vmem:[#allocation11 + $0x10] sm:$0xf]
    %v575 = vld [vmem:[#allocation11 + $0x14] sm:$0xf]
    %v576 = vld [vmem:[#allocation11 + $0x18] sm:$0xf]
    %v577 = vld [vmem:[#allocation11 + $0x1c] sm:$0xf]
    %v578 = vld [vmem:[#allocation11 + $0x20] sm:$0xf]
    %v579 = vld [vmem:[#allocation11 + $0x24] sm:$0xf]
    %v580 = vld [vmem:[#allocation11 + $0x28] sm:$0xf]
    %v581 = vld [vmem:[#allocation11 + $0x2c] sm:$0xf]
    %v582 = vld [vmem:[#allocation11 + $0x30] sm:$0xf]
    %v583 = vld [vmem:[#allocation11 + $0x34] sm:$0xf]
    %v584 = vld [vmem:[#allocation11 + $0x38] sm:$0xf]
    %v585 = vld [vmem:[#allocation11 + $0x3c] sm:$0xf]
    %v586 = vld [vmem:[#allocation11 + $0x40] sm:$0xf]
    %v587 = vld [vmem:[#allocation11 + $0x44] sm:$0xf]
    %v588 = vld [vmem:[#allocation11 + $0x48] sm:$0xf]
    %v589 = vld [vmem:[#allocation11 + $0x4c] sm:$0xf]
    %v590 = vld [vmem:[#allocation11 + $0x50] sm:$0xf]
    %v591 = vld [vmem:[#allocation11 + $0x54] sm:$0xf]
    %v592 = vld [vmem:[#allocation11 + $0x58] sm:$0xf]
    %v593 = vld [vmem:[#allocation11 + $0x5c] sm:$0xf]
    %v594 = vld [vmem:[#allocation11 + $0x60] sm:$0xf]
    %v595 = vld [vmem:[#allocation11 + $0x64] sm:$0xf]
    %v596 = vld [vmem:[#allocation11 + $0x68] sm:$0xf]
    %v597 = vld [vmem:[#allocation11 + $0x6c] sm:$0xf]
    %v598 = vld [vmem:[#allocation11 + $0x70] sm:$0xf]
    %v599 = vld [vmem:[#allocation11 + $0x74] sm:$0xf]
    %v600 = vld [vmem:[#allocation11 + $0x78] sm:$0xf]
    %v601 = vld [vmem:[#allocation11 + $0x7c] sm:$0xf]
    %v602 = vld [vmem:[%s9] sm:$0x1]
    %v604 = vperm.slane %v602, 0
    %v638 = vunpack.c.l.b16 %v570
    %v639 = vunpack.c.l.b16 %v571
    %v640 = vunpack.c.l.b16 %v572
    %v641 = vunpack.c.l.b16 %v573
    %v642 = vunpack.c.l.b16 %v574
    %v643 = vunpack.c.l.b16 %v575
    %v644 = vunpack.c.l.b16 %v576
    %v645 = vunpack.c.l.b16 %v577
    %v646 = vunpack.c.l.b16 %v578
    %v647 = vunpack.c.l.b16 %v579
    %v648 = vunpack.c.l.b16 %v580
    %v649 = vunpack.c.l.b16 %v581
    %v650 = vunpack.c.l.b16 %v582
    %v651 = vunpack.c.l.b16 %v583
    %v652 = vunpack.c.l.b16 %v584
    %v653 = vunpack.c.l.b16 %v585
    %v654 = vunpack.c.l.b16 %v586
    %v655 = vunpack.c.l.b16 %v587
    %v656 = vunpack.c.l.b16 %v588
    %v657 = vunpack.c.l.b16 %v589
    %v658 = vunpack.c.l.b16 %v590
    %v659 = vunpack.c.l.b16 %v591
    %v660 = vunpack.c.l.b16 %v592
    %v661 = vunpack.c.l.b16 %v593
    %v662 = vunpack.c.l.b16 %v594
    %v663 = vunpack.c.l.b16 %v595
    %v664 = vunpack.c.l.b16 %v596
    %v665 = vunpack.c.l.b16 %v597
    %v666 = vunpack.c.l.b16 %v598
    %v667 = vunpack.c.l.b16 %v599
    %v668 = vunpack.c.l.b16 %v600
    %v669 = vunpack.c.l.b16 %v601
    %v670 = vpack.c.b16 %v639, %v638
    %v671 = vpack.c.b16 %v641, %v640
    %v672 = vpack.c.b16 %v643, %v642
    %v673 = vpack.c.b16 %v645, %v644
    %v674 = vpack.c.b16 %v647, %v646
    %v675 = vpack.c.b16 %v649, %v648
    %v676 = vpack.c.b16 %v651, %v650
    %v677 = vpack.c.b16 %v653, %v652
    %v678 = vpack.c.b16 %v655, %v654
    %v679 = vpack.c.b16 %v657, %v656
    %v680 = vpack.c.b16 %v659, %v658
    %v681 = vpack.c.b16 %v661, %v660
    %v682 = vpack.c.b16 %v663, %v662
    %v683 = vpack.c.b16 %v665, %v664
    %v684 = vpack.c.b16 %v667, %v666
    %v685 = vpack.c.b16 %v669, %v668
    %702 = vmatpush.bf16.msra.mxu0 %v677
    %703 = vmatpush.bf16.msra.mxu0 %v676
    %704 = vmatpush.bf16.msra.mxu0 %v675
    %705 = vmatpush.bf16.msra.mxu0 %v674
    %706 = vmatpush.bf16.msra.mxu0 %v673
    %707 = vmatpush.bf16.msra.mxu0 %v672
    %708 = vmatpush.bf16.msra.mxu0 %v671
    %709 = vmatpush.bf16.msra.mxu0 %v670
    %710 = vmatmul.bf16.gmra.mxu0 %v568
    %v711 = vpop.f32.mrf.mxu0
    %v712 = vadd.f32 %v604, %v711
    %v713 = vpop.f32.mrf.mxu0
    %714 = vdwg.mxu0
    %715 = vmatpush.bf16.msra.mxu0 %v685
    %716 = vmatpush.bf16.msra.mxu0 %v684
    %717 = vmatpush.bf16.msra.mxu0 %v683
    %718 = vmatpush.bf16.msra.mxu0 %v682
    %719 = vmatpush.bf16.msra.mxu0 %v681
    %720 = vmatpush.bf16.msra.mxu0 %v680
    %721 = vmatpush.bf16.msra.mxu0 %v679
    %722 = vmatpush.bf16.msra.mxu0 %v678
    %723 = vmatmul.bf16.gmra.mxu0 %v569
    %v724 = vpop.f32.mrf.mxu0
    %v725 = vadd.f32 %v712, %v724
    %v726 = vpop.f32.mrf.mxu0
    %727 = vdwg.mxu0
    %728 = vst [vmem:[#allocation13] sm:$0xff] %v725
    // Predicated region
    $region66: #{tpu_custom_call.1} parent=1 // pred_check
      _
    $region67: #{tpu_custom_call.1} parent=1 // pred_check_branch
      %730 = sbr.rel (0) target = $region69
    $region68: #{tpu_custom_call.1} parent=1 // pred_region
      %732 = vsyncadd [#allocation4], 0
      %s734 = sshll.u32 [#allocation13], 4
      %s735 = int_to_ptr.vmem [resolvable:$true] %s734
      %s736 = sshll.u32 %s10, 4
      %s737 = int_to_ptr.hbm [resolvable:$true] %s736
      %739 = dma.vmem_to_hbm [thread:$0]  %s735, 128, %s737, [#allocation4]
    $region69: #{tpu_custom_call.1} parent=1 // pred_fallthru
      _
    // Predicated region
    $region70: #{tpu_custom_call.1} parent=1 // pred_check
      _
    $region71: #{tpu_custom_call.1} parent=1 // pred_check_branch
      %741 = sbr.rel (0) target = $region73
    $region72: #{tpu_custom_call.1} parent=1 // pred_region
      %743 = dma.done [#allocation4], 128
    $region73: #{tpu_custom_call.1} parent=1 // pred_fallthru
      _
    %744 = vsyncpa [#allocation3], 1
    %745 = vsyncpa [#allocation6], 1
    %746 = vsyncpa [#allocation9], 1
    %747 = vsyncpa [#allocation12], 1
    %748 = vsyncpa [#allocation4], 1

</llo_original>
